<compile_context>
chip_gen: v6e
topology: v6e:2x2x1
jax: 0.10.0
libtpu: 0.0.40
codegen_flags: <defaults>
</compile_context>

<pallas_src>
import numpy as np
import jax
import jax.numpy as jnp
from jax import lax
from jax.experimental import pallas as pl
from jax.experimental.pallas import tpu as pltpu


# ---------------------------------------------------------------------------
# Deterministic parameter init: cfg / h0 / h1 are external in the snippet, so
# we use the canonical length-2 Haar analysis filters (matching the
# Conv2d(1, 2, kernel_size=(1, 2)) weight shape (2, 1, 1, 2)).
# ---------------------------------------------------------------------------
_SQRT2 = float(np.sqrt(2.0))
H0 = np.array([1.0 / _SQRT2, 1.0 / _SQRT2], dtype=np.float32)   # lowpass
H1 = np.array([1.0 / _SQRT2, -1.0 / _SQRT2], dtype=np.float32)  # highpass
LL_FILT = np.stack([H0, H1], axis=0)   # (2, 2): row k = filter h_k, col p = tap


def _vmem_budget_bytes(default_cap=64 * 1024 * 1024):
    """Generation-aware VMEM cap (v7x: 64 MiB/TC, v5e/v6e: 128 MiB) with 25%
    headroom left for compiler scratch.  Falls back to the smallest (v7x)."""
    cap = default_cap
    try:
        cap = int(getattr(pltpu.get_tpu_info(), "vmem_capacity_bytes", cap) or cap)
    except Exception:
        pass
    return (cap * 3) // 4


def _choose_tile_w(W, max_wt=512):
    """W tile: full width if small, else a 512/256 divisor (multiple of 128 so
    both the matmul K dim and the Wo output tile are lane-aligned).  The filter
    stride equals its length, so tiles need no halo."""
    if W <= max_wt:
        return W
    for wt in (512, 256):
        if W % wt == 0:
            return wt
    # TODO(synk): ragged W tiling for large widths not divisible by 256.
    return W


def _choose_tile_h(Ho, WT, in_itemsize, budget_bytes, min_tiles=1):
    """Output-row tile TH dividing Ho: prefer multiples of 128 (MXU M dim),
    else multiples of 8; input tile (2*TH, WT) stays under budget_bytes."""
    max_th = max(8, int(budget_bytes) // max(1, 2 * WT * in_itemsize))
    max_th = min(max_th, Ho)
    if min_tiles > 1 and Ho >= 8 * min_tiles:
        max_th = min(max_th, Ho // min_tiles)   # keep >=2 parallel steps (v7x 2 TCs)
    for align in (128, 8):
        th = (max_th // align) * align
        while th >= align:
            if Ho % th == 0:
                return th
            th -= align
    # TODO(synk): cdiv grid + masked ragged last tile when Ho has no 8-aligned divisor.
    return Ho


def fre_transfer(x, ll_filt=LL_FILT, *, tile_h=None, out_dtype=None, matmul_dtype=None):
    """Pallas implementation of FreTransfer.forward.  x: (B, C, H, W) NCHW."""
    B, C, H, W = x.shape
    assert H % 2 == 0 and W % 2 == 0, "H and W must be even"
    Ho, Wo = H // 2, W // 2
    N = B * C

    out_dtype = np.dtype(x.dtype if out_dtype is None else out_dtype)
    if matmul_dtype is None:
        # bf16 MXU path only when it is lossless w.r.t. the input precision
        # (taps are exact +/-1 after factoring the 1/sqrt(2) scale out).
        mm_dtype = np.dtype(jnp.bfloat16) if x.dtype.itemsize <= 2 else np.dtype(jnp.float32)
    else:
        mm_dtype = np.dtype(matmul_dtype)

    xr = x.reshape(N, H, W)   # free view, native dtype (no wrapper cast / copy)

    # --- filter constants ---------------------------------------------------
    filt = np.asarray(ll_filt, dtype=np.float64)           # (2, 2)
    s = float(np.max(np.abs(filt)))                        # factored scale
    tn = filt / s                                          # +/-1 for Haar (exact in bf16)
    # H-direction 2-tap combine constants with the scale folded back in:
    c00, c01 = float(filt[0, 0] * s), float(filt[0, 1] * s)   # h0 along H (== 0.5, 0.5)
    c10, c11 = float(filt[1, 0] * s), float(filt[1, 1] * s)   # h1 along H (== 0.5, -0.5)

    # --- tiling ---------------------------------------------------------------
    WT = _choose_tile_w(W)
    WOT = WT // 2
    n_wt = W // WT
    vmem_budget = _vmem_budget_bytes()
    tile_budget = min(8 << 20, vmem_budget // 10)           # ~4-8 MiB of input per step
    min_tiles = 2 if (N == 1 and n_wt == 1) else 1
    TH = tile_h if tile_h is not None else _choose_tile_h(
        Ho, WT, x.dtype.itemsize, tile_budget, min_tiles)
    assert Ho % TH == 0, "tile_h must divide Ho"
    n_th = Ho // TH

    # Constant block-diagonal W-direction deinterleave+filter block, identical
    # for every W tile (stride == kernel length => no halo):
    #   (rows @ mw)[:, k*WOT + w] = sum_p tn[k, p] * rows[:, 2*w + p]
    mw_np = np.zeros((WT, 2 * WOT), dtype=np.float32)
    cols = np.arange(WOT)
    mw_np[2 * cols, cols] = tn[0, 0]            # lowpass, tap 0
    mw_np[2 * cols + 1, cols] = tn[0, 1]        # lowpass, tap 1
    mw_np[2 * cols, WOT + cols] = tn[1, 0]      # highpass, tap 0
    mw_np[2 * cols + 1, WOT + cols] = tn[1, 1]  # highpass, tap 1
    mw = jnp.asarray(mw_np, dtype=mm_dtype)

    def kernel(mw_ref, x_ref, o_ref):
        # H-parity split via sublane-strided reads of the (2*TH, WT) input tile.
        xe = x_ref[pl.ds(0, TH, 2), :].astype(mm_dtype)    # rows 2h
        xo = x_ref[pl.ds(1, TH, 2), :].astype(mm_dtype)    # rows 2h + 1
        mw_t = mw_ref[...]                                 # (WT, 2*WOT) = [low | high]
        # Fused W-direction deinterleave + filter: one MXU matmul per parity.
        re = jnp.dot(xe, mw_t, preferred_element_type=jnp.float32)   # (TH, 2*WOT)
        ro = jnp.dot(xo, mw_t, preferred_element_type=jnp.float32)
        le, he = re[:, :WOT], re[:, WOT:]
        lo, ho = ro[:, :WOT], ro[:, WOT:]
        # H-direction 2-tap combine with baked constants; torch subband order.
        o_ref[0] = (c00 * le + c01 * lo).astype(o_ref.dtype)   # ll
        o_ref[1] = (c10 * le + c11 * lo).astype(o_ref.dtype)   # hl
        o_ref[2] = (c00 * he + c01 * ho).astype(o_ref.dtype)   # lh
        o_ref[3] = (c10 * he + c11 * ho).astype(o_ref.dtype)   # hh

    # VMEM accounting: double-buffered in/out/taps + generous f32 intermediates,
    # clamped to the generation-aware budget (v7x TC has only 64 MiB of VMEM).
    in_tile = 2 * TH * WT * x.dtype.itemsize
    out_tile = 4 * TH * WOT * out_dtype.itemsize
    taps_bytes = WT * 2 * WOT * mm_dtype.itemsize      # <= ~1 MiB thanks to W tiling
    interm = 10 * TH * 2 * WOT * 4
    vmem_est = 2 * (in_tile + out_tile + taps_bytes) + interm
    vmem_limit = int(max(16 << 20, min(vmem_budget, 2 * vmem_est)))

    y = pl.pallas_call(
        kernel,
        grid=(N, n_th, n_wt),
        in_specs=[
            # Constant taps; small enough that the default double-buffering is harmless.
            pl.BlockSpec((WT, 2 * WOT), lambda n, h, j: (0, 0)),
            pl.BlockSpec((None, 2 * TH, WT), lambda n, h, j: (n, h, j)),
        ],
        out_specs=pl.BlockSpec((None, 4, TH, WOT), lambda n, h, j: (n, 0, h, j)),
        out_shape=jax.ShapeDtypeStruct((N, 4, Ho, Wo), out_dtype),
        compiler_params=pltpu.CompilerParams(
            dimension_semantics=("parallel", "parallel", "parallel"),
            vmem_limit_bytes=vmem_limit),
    )(mw, xr)

    if C == 1:
        # Free view; torch: out = cat([ll, hl, lh, hh], dim=1)
        return y.reshape(B, 4, Ho, Wo)
    # The torch module only supports C == 1 (its ll/hl/lh/hh buffers have one
    # channel); this subband-major ordering is its natural generalization and
    # costs one extra HBM pass for the transpose.
    return y.reshape(B, C, 4, Ho, Wo).transpose(0, 2, 1, 3, 4).reshape(B, 4 * C, Ho, Wo)


def _torch_reference(x, ll_filt=LL_FILT):
    """Pure-JAX replica of the PyTorch forward (chained conv2d path), in f32."""
    B, C, H, W = x.shape
    w1 = jnp.asarray(ll_filt, jnp.float32).reshape(2, 1, 1, 2)   # OIHW, k=(1,2)
    w2 = jnp.transpose(w1, (0, 1, 3, 2))                         # (2,1,2,1)
    dn = ("NCHW", "OIHW", "NCHW")
    per_channel = []
    for c in range(C):
        xc = x[:, c:c + 1].astype(jnp.float32)
        ll_ = lax.conv_general_dilated(xc, w1, (1, 2), "VALID", dimension_numbers=dn)
        ys = [lax.conv_general_dilated(ll_[:, j:j + 1], w2, (2, 1), "VALID",
                                       dimension_numbers=dn) for j in range(2)]
        per_channel.append(jnp.concatenate(ys, axis=1))          # (B, 4, H/2, W/2)
    y = jnp.stack(per_channel, axis=2)                           # (B, 4, C, H/2, W/2)
    return y.reshape(B, 4 * C, H // 2, W // 2)


if __name__ == "__main__":
    key = jax.random.PRNGKey(0)
    k1, k2, k3 = jax.random.split(key, 3)

    # 1) Small canonical case (the torch module itself only supports C == 1).
    B, C, H, W = 2, 1, 16, 16
    x1 = jax.random.normal(k1, (B, C, H, W), dtype=jnp.float32)
    out1 = jax.block_until_ready(fre_transfer(x1))
    ref1 = _torch_reference(x1)
    assert out1.shape == (B, 4 * C, H // 2, W // 2)
    if not np.allclose(np.asarray(out1), np.asarray(ref1), rtol=1e-4, atol=1e-4):
        raise SystemExit("kernel output does not match reference (test 1)")

    # 2) W-tiled path: W=1024 -> WT=512 (two parallel W tiles), TH=128 (MXU M dim).
    x2 = jax.random.normal(k2, (1, 1, 256, 1024), dtype=jnp.float32)
    out2 = jax.block_until_ready(fre_transfer(x2))
    ref2 = _torch_reference(x2)
    if not np.allclose(np.asarray(out2), np.asarray(ref2), rtol=1e-4, atol=1e-4):
        raise SystemExit("kernel output does not match reference (test 2)")

    # 3) bf16-MXU path (+/-1 taps exact, LHS rounded to bf16) + H-tiled grid
    #    (N == 1, single W tile -> two H tiles keep both v7x TCs busy).
    x3 = jax.random.normal(k3, (1, 1, 32, 256), dtype=jnp.float32)
    out3 = jax.block_until_ready(fre_transfer(x3, matmul_dtype=jnp.bfloat16))
    ref3 = _torch_reference(x3)
    if not np.allclose(np.asarray(out3), np.asarray(ref3), rtol=1e-2, atol=1e-2):
        raise SystemExit("kernel output does not match reference (test 3)")

    print("KERNEL_OK")
</pallas_src>

<mosaic_0001>
module attributes {stable_mosaic.version = 11 : i64} {
  func.func @kernel(%arg0: i32, %arg1: i32, %arg2: i32, %arg3: memref<16x16xf32, #tpu.memory_space<vmem>>, %arg4: memref<1x16x16xf32, #tpu.memory_space<vmem>>, %arg5: memref<1x4x8x8xf32, #tpu.memory_space<vmem>>) attributes {dimension_semantics = [#tpu.dimension_semantics<parallel>, #tpu.dimension_semantics<parallel>, #tpu.dimension_semantics<parallel>], iteration_bounds = array<i64: 2, 1, 1>, scalar_prefetch = 0 : i64, scratch_operands = 0 : i64, tpu.core_type = #tpu.core_type<tc>, window_params = [{pipeline_mode = #tpu.pipeline_mode<synchronous>, transform_indices = @transform_0, window_bounds = array<i64: 16, 16>}, {transform_indices = @transform_1, window_bounds = array<i64: 1, 16, 16>}, {transform_indices = @transform_2, window_bounds = array<i64: 1, 4, 8, 8>}]} {
    %c0 = arith.constant 0 : index
    %c0_0 = arith.constant 0 : index
    %c0_1 = arith.constant 0 : index
    %0 = tpu.strided_load %arg4[%c0, %c0_0, %c0_1] {strides = array<i32: 1, 2, 1>} : memref<1x16x16xf32, #tpu.memory_space<vmem>>, vector<1x8x16xf32>
    %1 = vector.shape_cast %0 : vector<1x8x16xf32> to vector<8x16xf32>
    %c0_2 = arith.constant 0 : index
    %c1 = arith.constant 1 : index
    %c0_3 = arith.constant 0 : index
    %2 = tpu.strided_load %arg4[%c0_2, %c1, %c0_3] {strides = array<i32: 1, 2, 1>} : memref<1x16x16xf32, #tpu.memory_space<vmem>>, vector<1x8x16xf32>
    %3 = vector.shape_cast %2 : vector<1x8x16xf32> to vector<8x16xf32>
    %c0_4 = arith.constant 0 : index
    %c0_5 = arith.constant 0 : index
    %4 = vector.load %arg3[%c0_4, %c0_5] : memref<16x16xf32, #tpu.memory_space<vmem>>, vector<16x16xf32>
    %cst = arith.constant dense<0.000000e+00> : vector<8x16xf32>
    %5 = tpu.matmul %1, %4, %cst {dimension_numbers = #tpu.dot_dimension_numbers<[1], [0], [0], [1], [0, 0, 1, 1], [], []>} : vector<8x16xf32>, vector<16x16xf32>, vector<8x16xf32> -> vector<8x16xf32>
    %cst_6 = arith.constant dense<0.000000e+00> : vector<8x16xf32>
    %6 = tpu.matmul %3, %4, %cst_6 {dimension_numbers = #tpu.dot_dimension_numbers<[1], [0], [0], [1], [0, 0, 1, 1], [], []>} : vector<8x16xf32>, vector<16x16xf32>, vector<8x16xf32> -> vector<8x16xf32>
    %7 = vector.extract_strided_slice %5 {offsets = [0, 0], sizes = [8, 8], strides = [1, 1]} : vector<8x16xf32> to vector<8x8xf32>
    %8 = vector.extract_strided_slice %5 {offsets = [0, 8], sizes = [8, 8], strides = [1, 1]} : vector<8x16xf32> to vector<8x8xf32>
    %9 = vector.extract_strided_slice %6 {offsets = [0, 0], sizes = [8, 8], strides = [1, 1]} : vector<8x16xf32> to vector<8x8xf32>
    %10 = vector.extract_strided_slice %6 {offsets = [0, 8], sizes = [8, 8], strides = [1, 1]} : vector<8x16xf32> to vector<8x8xf32>
    %cst_7 = arith.constant 0.49999997 : f32
    %11 = vector.broadcast %cst_7 : f32 to vector<8x8xf32>
    %12 = arith.mulf %11, %7 : vector<8x8xf32>
    %cst_8 = arith.constant 0.49999997 : f32
    %13 = vector.broadcast %cst_8 : f32 to vector<8x8xf32>
    %14 = arith.mulf %13, %9 : vector<8x8xf32>
    %15 = arith.addf %12, %14 : vector<8x8xf32>
    %c0_9 = arith.constant 0 : index
    %c0_10 = arith.constant 0 : index
    %c0_11 = arith.constant 0 : index
    %c0_12 = arith.constant 0 : index
    %16 = vector.load %arg5[%c0_9, %c0_10, %c0_11, %c0_12] : memref<1x4x8x8xf32, #tpu.memory_space<vmem>>, vector<1x1x8x8xf32>
    %17 = vector.shape_cast %16 : vector<1x1x8x8xf32> to vector<8x8xf32>
    %18 = vector.shape_cast %15 : vector<8x8xf32> to vector<1x1x8x8xf32>
    tpu.vector_store %arg5[%c0_9, %c0_10, %c0_11, %c0_12], %18 {strides = array<i32>} : memref<1x4x8x8xf32, #tpu.memory_space<vmem>>, vector<1x1x8x8xf32>,
    %cst_13 = arith.constant 0.49999997 : f32
    %19 = vector.broadcast %cst_13 : f32 to vector<8x8xf32>
    %20 = arith.mulf %19, %7 : vector<8x8xf32>
    %cst_14 = arith.constant -0.49999997 : f32
    %21 = vector.broadcast %cst_14 : f32 to vector<8x8xf32>
    %22 = arith.mulf %21, %9 : vector<8x8xf32>
    %23 = arith.addf %20, %22 : vector<8x8xf32>
    %c0_15 = arith.constant 0 : index
    %c1_16 = arith.constant 1 : index
    %c0_17 = arith.constant 0 : index
    %c0_18 = arith.constant 0 : index
    %24 = vector.load %arg5[%c0_15, %c1_16, %c0_17, %c0_18] : memref<1x4x8x8xf32, #tpu.memory_space<vmem>>, vector<1x1x8x8xf32>
    %25 = vector.shape_cast %24 : vector<1x1x8x8xf32> to vector<8x8xf32>
    %26 = vector.shape_cast %23 : vector<8x8xf32> to vector<1x1x8x8xf32>
    tpu.vector_store %arg5[%c0_15, %c1_16, %c0_17, %c0_18], %26 {strides = array<i32>} : memref<1x4x8x8xf32, #tpu.memory_space<vmem>>, vector<1x1x8x8xf32>,
    %cst_19 = arith.constant 0.49999997 : f32
    %27 = vector.broadcast %cst_19 : f32 to vector<8x8xf32>
    %28 = arith.mulf %27, %8 : vector<8x8xf32>
    %cst_20 = arith.constant 0.49999997 : f32
    %29 = vector.broadcast %cst_20 : f32 to vector<8x8xf32>
    %30 = arith.mulf %29, %10 : vector<8x8xf32>
    %31 = arith.addf %28, %30 : vector<8x8xf32>
    %c0_21 = arith.constant 0 : index
    %c2 = arith.constant 2 : index
    %c0_22 = arith.constant 0 : index
    %c0_23 = arith.constant 0 : index
    %32 = vector.load %arg5[%c0_21, %c2, %c0_22, %c0_23] : memref<1x4x8x8xf32, #tpu.memory_space<vmem>>, vector<1x1x8x8xf32>
    %33 = vector.shape_cast %32 : vector<1x1x8x8xf32> to vector<8x8xf32>
    %34 = vector.shape_cast %31 : vector<8x8xf32> to vector<1x1x8x8xf32>
    tpu.vector_store %arg5[%c0_21, %c2, %c0_22, %c0_23], %34 {strides = array<i32>} : memref<1x4x8x8xf32, #tpu.memory_space<vmem>>, vector<1x1x8x8xf32>,
    %cst_24 = arith.constant 0.49999997 : f32
    %35 = vector.broadcast %cst_24 : f32 to vector<8x8xf32>
    %36 = arith.mulf %35, %8 : vector<8x8xf32>
    %cst_25 = arith.constant -0.49999997 : f32
    %37 = vector.broadcast %cst_25 : f32 to vector<8x8xf32>
    %38 = arith.mulf %37, %10 : vector<8x8xf32>
    %39 = arith.addf %36, %38 : vector<8x8xf32>
    %c0_26 = arith.constant 0 : index
    %c3 = arith.constant 3 : index
    %c0_27 = arith.constant 0 : index
    %c0_28 = arith.constant 0 : index
    %40 = vector.load %arg5[%c0_26, %c3, %c0_27, %c0_28] : memref<1x4x8x8xf32, #tpu.memory_space<vmem>>, vector<1x1x8x8xf32>
    %41 = vector.shape_cast %40 : vector<1x1x8x8xf32> to vector<8x8xf32>
    %42 = vector.shape_cast %39 : vector<8x8xf32> to vector<1x1x8x8xf32>
    tpu.vector_store %arg5[%c0_26, %c3, %c0_27, %c0_28], %42 {strides = array<i32>} : memref<1x4x8x8xf32, #tpu.memory_space<vmem>>, vector<1x1x8x8xf32>,
    return
  }
  func.func @transform_0(%arg0: i32, %arg1: i32, %arg2: i32) -> (i32, i32) {
    %c0_i32 = arith.constant 0 : i32
    %c0_i32_0 = arith.constant 0 : i32
    %c0_i32_1 = arith.constant 0 : i32
    return %c0_i32, %c0_i32_0 : i32, i32
  }
  func.func @transform_1(%arg0: i32, %arg1: i32, %arg2: i32) -> (i32, i32, i32) {
    %c0_i32 = arith.constant 0 : i32
    return %arg0, %arg1, %arg2 : i32, i32, i32
  }
  func.func @transform_2(%arg0: i32, %arg1: i32, %arg2: i32) -> (i32, i32, i32, i32) {
    %c0_i32 = arith.constant 0 : i32
    %c0_i32_0 = arith.constant 0 : i32
    return %arg0, %c0_i32, %arg1, %arg2 : i32, i32, i32, i32
  }
}

</mosaic_0001>

<llo_original>
// kernel: tpu_custom_call.1
$region0: #{tpu_custom_call.1}
  #allocation0 [shape = 'u32[]', space=smem, size = 0x4, offset = 0x4, fixed_abs, tag = 'smem constant byte address 0x4 - core index']
  #allocation1 [shape = 'u32[144,128]{1,0:T(1,128)}', space=vmem, size = 0x12000, scoped, tag = 'internal scratch']
  %s0 = inlined_call_operand.hbm [shape: f32[16,16], index: 0, kind: input, shape index: {}]
  %s1 = inlined_call_operand.hbm [shape: f32[2,16,16], index: 1, kind: input, shape index: {}]
  %s2 = inlined_call_operand.hbm [shape: f32[2,4,8,8], index: 2, kind: output, shape index: {}]
  %s3 = sld [smem:[#allocation0]]
  $region49: #{tpu_custom_call.1} parent=0
    _
  %s5 = ssub.s32 1, %s3
  %s6 = scalar_select 0, %s5, %s3
  $region1: #{tpu_custom_call.1} parent=0
    #allocation2 [shape = 'u8[8192]{0}', space=vmem, size = 0x2000, scoped, tag = 'input window, operand 0, single buffered']
    #allocation3 [shape = 's32[2]{0}', space=sflag, size = 0x8, scoped, tag = 'scoped memory for tpu_custom_call.1']
    #allocation4 [shape = 's32[2]{0}', space=sflag, size = 0x8, scoped, tag = 'scoped memory for tpu_custom_call.1']
    #allocation5 [shape = 'u8[16384]{0}', space=vmem, size = 0x4000, scoped, tag = 'input window, operand 1']
    #allocation6 [shape = 's32[2]{0}', space=sflag, size = 0x8, scoped, tag = 'scoped memory for tpu_custom_call.1']
    #allocation7 [shape = 'u8[32768]{0}', space=vmem, size = 0x8000, scoped, tag = 'output window, operand 0']
    %7 = vsyncpa [#allocation3], 0
    %8 = vsyncpa [#allocation6], 0
    %s9 = scalar_lea.sflag [#allocation6], 1
    %10 = vsyncpa %s9, 0
    %11 = vsyncpa [#allocation4], 0
    %s12 = scalar_lea.sflag [#allocation4], 1
    %13 = vsyncpa %s12, 0
    loop: start=0, step=1, limit=4
    $region2: #{tpu_custom_call.1} parent=1 // loop_pre_header
      _
    $region3: #{tpu_custom_call.1} parent=1 // loop_header
      %s15 = sphi 0, %s19
      %p16 = scmp.ge.s32.totalorder %s15, 4
      %s22 = sphi 0, %s41
      %s23 = sphi 0, %s37
      %s24 = sphi 0, %s33
      %s25 = sphi 0, %s22
      %s26 = sphi 0, %s23
      %s27 = sphi 0, %s24
      %s28 = sphi 0, %s25
      %s29 = sphi 0, %s26
      %s30 = sphi 0, %s27
      %s42 = sphi 0, %s42
      %s44 = sphi 0, %s42
      %s45 = sphi 0, %s44
      %s59 = sphi 0, %s45
      %s69 = sphi 0, %s71
      %s72 = sphi 0, %s69
      %s73 = sphi 0, %s72
      %s89 = sphi 0, %s73
      %s99 = sphi 0, %s101
      %s102 = sphi 0, %s99
      %s103 = sphi 0, %s102
      %s119 = sphi 0, %s103
    $region4: #{tpu_custom_call.1} parent=1 // loop_header_branch
      %18 = sbr.rel (%p16) target = $region8
    $region5: #{tpu_custom_call.1} parent=1 // loop_body
      %s20 = ssub.s32 %s15, 1
      %s21 = ssub.s32 %s15, 2
      %s31 = sadd.s32 1, %s24
      %p32 = scmp.ge.s32.totalorder %s31, 1
      %s33 = scalar_select %p32, 0, %s31
      %s34 = sadd.s32 1, %s23
      %s35 = scalar_select %p32, %s34, %s23
      %p36 = scmp.ge.s32.totalorder %s35, 1
      %s37 = scalar_select %p36, 0, %s35
      %s38 = sadd.s32 1, %s22
      %s39 = scalar_select %p36, %s38, %s22
      %p40 = scmp.ge.s32.totalorder %s39, 2
      %s41 = scalar_select %p40, 0, %s39
      %s43 = sadd.s32 %s42, 1
      %p46 = scmp.eq.s32.totalorder %s15, 1
      %p47 = scmp.ne.s32.totalorder %s42, %s44
      %p48 = scmp.eq.s32.totalorder %s15, 0
      %p49 = por %p47, %p48
      %p50 = scmp.ne.s32.totalorder %s42, %s44
      %p51 = scmp.eq.s32.totalorder %s20, 1
      %p52 = por %p50, %p51
      %p53 = scmp.ne.s32.totalorder %s44, %s45
      %p54 = scmp.eq.s32.totalorder %s20, 0
      %p55 = por %p53, %p54
      %p56 = scmp.ne.s32.totalorder %s44, %s45
      %p57 = scmp.eq.s32.totalorder %s21, 1
      %p58 = por %p56, %p57
      %p60 = scmp.ne.s32.totalorder %s45, %s59
      %p61 = scmp.eq.s32.totalorder %s21, 0
      %p62 = por %p60, %p61
      %s63 = ssub.s32 %s22, %s41
      %s64 = ssub.s32 %s23, %s37
      %s65 = sor.u32 %s63, %s64
      %s66 = ssub.s32 %s24, %s33
      %s67 = sor.u32 %s65, %s66
      %p68 = scmp.eq.s32.totalorder %s67, 0
      %s70 = sadd.s32 %s69, 1
      %s71 = scalar_select %p68, %s69, %s70
      %p74 = pneg %p68
      %p75 = scmp.eq.s32.totalorder %s15, 1
      %p76 = por %p74, %p75
      %p77 = scmp.ne.s32.totalorder %s69, %s72
      %p78 = scmp.eq.s32.totalorder %s15, 0
      %p79 = por %p77, %p78
      %p80 = scmp.ne.s32.totalorder %s69, %s72
      %p81 = scmp.eq.s32.totalorder %s20, 1
      %p82 = por %p80, %p81
      %p83 = scmp.ne.s32.totalorder %s72, %s73
      %p84 = scmp.eq.s32.totalorder %s20, 0
      %p85 = por %p83, %p84
      %p86 = scmp.ne.s32.totalorder %s72, %s73
      %p87 = scmp.eq.s32.totalorder %s21, 1
      %p88 = por %p86, %p87
      %p90 = scmp.ne.s32.totalorder %s73, %s89
      %p91 = scmp.eq.s32.totalorder %s21, 0
      %p92 = por %p90, %p91
      %s93 = ssub.s32 %s22, %s41
      %s94 = ssub.s32 %s23, %s37
      %s95 = sor.u32 %s93, %s94
      %s96 = ssub.s32 %s24, %s33
      %s97 = sor.u32 %s95, %s96
      %p98 = scmp.eq.s32.totalorder %s97, 0
      %s100 = sadd.s32 %s99, 1
      %s101 = scalar_select %p98, %s99, %s100
      %p104 = pneg %p98
      %p105 = scmp.eq.s32.totalorder %s15, 1
      %p106 = por %p104, %p105
      %p107 = scmp.ne.s32.totalorder %s99, %s102
      %p108 = scmp.eq.s32.totalorder %s15, 0
      %p109 = por %p107, %p108
      %p110 = scmp.ne.s32.totalorder %s99, %s102
      %p111 = scmp.eq.s32.totalorder %s20, 1
      %p112 = por %p110, %p111
      %p113 = scmp.ne.s32.totalorder %s102, %s103
      %p114 = scmp.eq.s32.totalorder %s20, 0
      %p115 = por %p113, %p114
      %p116 = scmp.ne.s32.totalorder %s102, %s103
      %p117 = scmp.eq.s32.totalorder %s21, 1
      %p118 = por %p116, %p117
      %p120 = scmp.ne.s32.totalorder %s103, %s119
      %p121 = scmp.eq.s32.totalorder %s21, 0
      %p122 = por %p120, %p121
      %p123 = scmp.le.s32.totalorder 1, %s15
      %p124 = scmp.lt.s32.totalorder %s15, 3
      %p125 = pnand %p123, %p124
      %p126 = pneg %p125
      // Predicated region
      $region9: #{tpu_custom_call.1} parent=5 // pred_check
        _
      $region10: #{tpu_custom_call.1} parent=5 // pred_check_branch
        %128 = sbr.rel (%p125) target = $region12
      $region11: #{tpu_custom_call.1} parent=5 // pred_region
        %s129 = ssub.s32 %s15, 1
        // Predicated region
        $region13: #{tpu_custom_call.1} parent=11 // pred_check
          %p130 = pneg %p55
        $region14: #{tpu_custom_call.1} parent=11 // pred_check_branch
          %132 = sbr.rel (%p130) target = $region16
        $region15: #{tpu_custom_call.1} parent=11 // pred_region
          %s134 = ssub.s32 256, 256
          %135 = vsyncadd [#allocation3], %s134
          %s136 = sshll.u32 [#allocation2], 4
          %s137 = int_to_ptr.vmem [resolvable:$true] %s136
          %142 = dma.hbm_to_vmem [thread:$0]  %s0, 256, %s137, [#allocation3], 128, 128, 8
        $region16: #{tpu_custom_call.1} parent=11 // pred_fallthru
          _
      $region12: #{tpu_custom_call.1} parent=5 // pred_fallthru
        _
      %p143 = scmp.lt.s32.totalorder %s15, 2
      // Predicated region
      $region17: #{tpu_custom_call.1} parent=5 // pred_check
        %p144 = pneg %p143
      $region18: #{tpu_custom_call.1} parent=5 // pred_check_branch
        %146 = sbr.rel (%p144) target = $region20
      $region19: #{tpu_custom_call.1} parent=5 // pred_region
        // Predicated region
        $region21: #{tpu_custom_call.1} parent=19 // pred_check
          %p147 = pneg %p79
        $region22: #{tpu_custom_call.1} parent=19 // pred_check_branch
          %149 = sbr.rel (%p147) target = $region24
        $region23: #{tpu_custom_call.1} parent=19 // pred_region
          %s150 = sand.u32 %s69, 1
          %s151 = scalar_lea.sflag [#allocation6], %s150
          %s152 = sand.u32 %s69, 1
          %s153 = smul.addr %s152, 16
          %s154 = scalar_lea.vmem [#allocation5], %s153
          %s155 = smul.u32 2, %s23
          %s157 = ssub.s32 256, 256
          %158 = vsyncadd %s151, %s157
          %s159 = sadd.s32 %s24, %s155
          %s160 = smul.addr %s22, 2
          %s161 = sadd.s32 %s159, %s160
          %s162 = smul.addr %s161, 128
          %s163 = scalar_lea.hbm %s1, %s162
          %s164 = sshll.u32 %s154, 4
          %s165 = int_to_ptr.vmem [resolvable:$true] %s164
          %170 = dma.hbm_to_vmem [thread:$0]  %s163, 256, %s165, %s151, 128, 128, 8
        $region24: #{tpu_custom_call.1} parent=19 // pred_fallthru
          _
      $region20: #{tpu_custom_call.1} parent=5 // pred_fallthru
        _
      %p171 = scmp.le.s32.totalorder 1, %s15
      %p172 = scmp.lt.s32.totalorder %s15, 3
      %p173 = pnand %p171, %p172
      %p174 = pneg %p173
      // Predicated region
      $region25: #{tpu_custom_call.1} parent=5 // pred_check
        _
      $region26: #{tpu_custom_call.1} parent=5 // pred_check_branch
        %176 = sbr.rel (%p173) target = $region28
      $region27: #{tpu_custom_call.1} parent=5 // pred_region
        %s177 = ssub.s32 %s15, 1
        // Predicated region
        $region29: #{tpu_custom_call.1} parent=27 // pred_check
          %p178 = pneg %p55
        $region30: #{tpu_custom_call.1} parent=27 // pred_check_branch
          %180 = sbr.rel (%p178) target = $region32
        $region31: #{tpu_custom_call.1} parent=27 // pred_region
          %181 = dma.done [#allocation3], 256
        $region32: #{tpu_custom_call.1} parent=27 // pred_fallthru
          _
        %s182 = sand.u32 %s72, 1
        %s183 = scalar_lea.sflag [#allocation6], %s182
        %s184 = sand.u32 %s72, 1
        %s185 = smul.addr %s184, 16
        %s186 = scalar_lea.vmem [#allocation5], %s185
        // Predicated region
        $region33: #{tpu_custom_call.1} parent=27 // pred_check
          %p187 = pneg %p85
        $region34: #{tpu_custom_call.1} parent=27 // pred_check_branch
          %189 = sbr.rel (%p187) target = $region36
        $region35: #{tpu_custom_call.1} parent=27 // pred_region
          %190 = dma.done %s183, 256
        $region36: #{tpu_custom_call.1} parent=27 // pred_fallthru
          _
        %p191 = pneg %p55
        %p192 = pneg %p52
        %s193 = sand.u32 %s72, 1
        %s194 = scalar_lea.sflag [#allocation6], %s193
        %s195 = sand.u32 %s72, 1
        %s196 = smul.addr %s195, 16
        %s197 = scalar_lea.vmem [#allocation5], %s196
        %p198 = pneg %p85
        %p199 = pneg %p82
        %p200 = pneg %p115
        %p201 = pneg %p112
        %s202 = sand.u32 %s102, 1
        %s203 = scalar_lea.sflag [#allocation4], %s202
        %s204 = sand.u32 %s102, 1
        %s205 = smul.addr %s204, 32
        %s206 = scalar_lea.vmem [#allocation7], %s205
        %s207 = smul.u32 2, %s26
        %v208 = vld [vmem:[%s186] ss:$2 sm:$0xff]
        %s209 = scalar_lea.vmem %s186, 1 [#allocation5]
        %v210 = vld [vmem:[%s209] ss:$2 sm:$0xff]
        %v211 = vld [vmem:[#allocation2] sm:$0xff]
        %v212 = vld [vmem:[#allocation2 + $0x8] sm:$0xff]
        %vm213 = vcmask 130048
        %v215 = vsel %vm213, %v208, 0
        %217 = vmatprep.subr.mxu0 0.0
        %218 = vmatpush1.msra.mxu0 0.0
        %219 = vmatprep.subr.mxu0 0.0
        %220 = vmatpush1.msra.mxu0 0.0
        %221 = vmatprep.subr.mxu0 0.0
        %222 = vmatpush1.msra.mxu0 0.0
        %223 = vmatprep.subr.mxu0 0.0
        %224 = vmatpush1.msra.mxu0 0.0
        %225 = vmatprep.subr.mxu0 0.0
        %226 = vmatpush1.msra.mxu0 0.0
        %227 = vmatprep.subr.mxu0 0.0
        %228 = vmatpush1.msra.mxu0 0.0
        %229 = vmatprep.subr.mxu0 0.0
        %230 = vmatpush1.msra.mxu0 0.0
        %231 = vmatprep.subr.mxu0 0.0
        %232 = vmatpush1.msra.mxu0 0.0
        %233 = vmatprep.subr.mxu0 0.0
        %234 = vmatpush1.msra.mxu0 0.0
        %235 = vmatprep.subr.mxu0 0.0
        %236 = vmatpush1.msra.mxu0 0.0
        %237 = vmatprep.subr.mxu0 0.0
        %238 = vmatpush1.msra.mxu0 0.0
        %239 = vmatprep.subr.mxu0 0.0
        %240 = vmatpush1.msra.mxu0 0.0
        %241 = vmatprep.subr.mxu0 0.0
        %242 = vmatpush1.msra.mxu0 0.0
        %243 = vmatprep.subr.mxu0 0.0
        %244 = vmatpush1.msra.mxu0 0.0
        %245 = vmatprep.subr.mxu0 0.0
        %246 = vmatpush1.msra.mxu0 %v212
        %247 = vmatprep.subr.mxu0 0.0
        %248 = vmatpush1.msra.mxu0 %v211
        %249 = vmatprep.subr.mxu0 0.0
        %250 = vmatpush2.msra.mxu0 0.0
        %251 = vmatprep.subr.mxu0 0.0
        %252 = vmatpush2.msra.mxu0 0.0
        %253 = vmatprep.subr.mxu0 0.0
        %254 = vmatpush2.msra.mxu0 0.0
        %255 = vmatprep.subr.mxu0 0.0
        %256 = vmatpush2.msra.mxu0 0.0
        %257 = vmatprep.subr.mxu0 0.0
        %258 = vmatpush2.msra.mxu0 0.0
        %259 = vmatprep.subr.mxu0 0.0
        %260 = vmatpush2.msra.mxu0 0.0
        %261 = vmatprep.subr.mxu0 0.0
        %262 = vmatpush2.msra.mxu0 0.0
        %263 = vmatprep.subr.mxu0 0.0
        %264 = vmatpush2.msra.mxu0 0.0
        %265 = vmatprep.subr.mxu0 0.0
        %266 = vmatpush2.msra.mxu0 0.0
        %267 = vmatprep.subr.mxu0 0.0
        %268 = vmatpush2.msra.mxu0 0.0
        %269 = vmatprep.subr.mxu0 0.0
        %270 = vmatpush2.msra.mxu0 0.0
        %271 = vmatprep.subr.mxu0 0.0
        %272 = vmatpush2.msra.mxu0 0.0
        %273 = vmatprep.subr.mxu0 0.0
        %274 = vmatpush2.msra.mxu0 0.0
        %275 = vmatprep.subr.mxu0 0.0
        %276 = vmatpush2.msra.mxu0 0.0
        %277 = vmatprep.subr.mxu0 0.0
        %278 = vmatpush2.msra.mxu0 0.0
        %279 = vmatprep.subr.mxu0 0.0
        %280 = vmatpush2.msra.mxu0 0.0
        %281 = vmatprep.mubr.f32.mxu0 0.0
        %282 = vmatmul.mubr.f32.gmra.mxu0 %v215
        %v283 = vpop.f32.mrf.mxu0
        %v284 = vadd.f32 0.0, %v283
        %v285 = vpop.f32.mrf.mxu0
        %286 = vdwg.mxu0
        %v288 = vsel %vm213, %v210, 0
        %290 = vmatprep.subr.mxu0 0.0
        %291 = vmatpush1.msra.mxu0 0.0
        %292 = vmatprep.subr.mxu0 0.0
        %293 = vmatpush1.msra.mxu0 0.0
        %294 = vmatprep.subr.mxu0 0.0
        %295 = vmatpush1.msra.mxu0 0.0
        %296 = vmatprep.subr.mxu0 0.0
        %297 = vmatpush1.msra.mxu0 0.0
        %298 = vmatprep.subr.mxu0 0.0
        %299 = vmatpush1.msra.mxu0 0.0
        %300 = vmatprep.subr.mxu0 0.0
        %301 = vmatpush1.msra.mxu0 0.0
        %302 = vmatprep.subr.mxu0 0.0
        %303 = vmatpush1.msra.mxu0 0.0
        %304 = vmatprep.subr.mxu0 0.0
        %305 = vmatpush1.msra.mxu0 0.0
        %306 = vmatprep.subr.mxu0 0.0
        %307 = vmatpush1.msra.mxu0 0.0
        %308 = vmatprep.subr.mxu0 0.0
        %309 = vmatpush1.msra.mxu0 0.0
        %310 = vmatprep.subr.mxu0 0.0
        %311 = vmatpush1.msra.mxu0 0.0
        %312 = vmatprep.subr.mxu0 0.0
        %313 = vmatpush1.msra.mxu0 0.0
        %314 = vmatprep.subr.mxu0 0.0
        %315 = vmatpush1.msra.mxu0 0.0
        %316 = vmatprep.subr.mxu0 0.0
        %317 = vmatpush1.msra.mxu0 0.0
        %318 = vmatprep.subr.mxu0 0.0
        %319 = vmatpush1.msra.mxu0 %v212
        %320 = vmatprep.subr.mxu0 0.0
        %321 = vmatpush1.msra.mxu0 %v211
        %322 = vmatprep.subr.mxu0 0.0
        %323 = vmatpush2.msra.mxu0 0.0
        %324 = vmatprep.subr.mxu0 0.0
        %325 = vmatpush2.msra.mxu0 0.0
        %326 = vmatprep.subr.mxu0 0.0
        %327 = vmatpush2.msra.mxu0 0.0
        %328 = vmatprep.subr.mxu0 0.0
        %329 = vmatpush2.msra.mxu0 0.0
        %330 = vmatprep.subr.mxu0 0.0
        %331 = vmatpush2.msra.mxu0 0.0
        %332 = vmatprep.subr.mxu0 0.0
        %333 = vmatpush2.msra.mxu0 0.0
        %334 = vmatprep.subr.mxu0 0.0
        %335 = vmatpush2.msra.mxu0 0.0
        %336 = vmatprep.subr.mxu0 0.0
        %337 = vmatpush2.msra.mxu0 0.0
        %338 = vmatprep.subr.mxu0 0.0
        %339 = vmatpush2.msra.mxu0 0.0
        %340 = vmatprep.subr.mxu0 0.0
        %341 = vmatpush2.msra.mxu0 0.0
        %342 = vmatprep.subr.mxu0 0.0
        %343 = vmatpush2.msra.mxu0 0.0
        %344 = vmatprep.subr.mxu0 0.0
        %345 = vmatpush2.msra.mxu0 0.0
        %346 = vmatprep.subr.mxu0 0.0
        %347 = vmatpush2.msra.mxu0 0.0
        %348 = vmatprep.subr.mxu0 0.0
        %349 = vmatpush2.msra.mxu0 0.0
        %350 = vmatprep.subr.mxu0 0.0
        %351 = vmatpush2.msra.mxu0 0.0
        %352 = vmatprep.subr.mxu0 0.0
        %353 = vmatpush2.msra.mxu0 0.0
        %354 = vmatprep.mubr.f32.mxu0 0.0
        %355 = vmatmul.mubr.f32.gmra.mxu0 %v288
        %v356 = vpop.f32.mrf.mxu0
        %v357 = vadd.f32 0.0, %v356
        %v358 = vpop.f32.mrf.mxu0
        %359 = vdwg.mxu0
        %v360 = vmul.f32 %v284, 0.49999997
        %v361 = vmul.f32 %v357, 0.49999997
        %v362 = vadd.f32 %v360, %v361
        %vm363 = vcmask 64512
        %364 = vst.msk [vmem:[%s206] sm:$0xff] %vm363, %v362
        %v365 = vmul.f32 %v357, -0.49999997
        %v366 = vadd.f32 %v360, %v365
        %s367 = scalar_lea.vmem %s206, 8 [#allocation7]
        %368 = vst.msk [vmem:[%s367] sm:$0xff] %vm363, %v366
        %370 = vrot.lane.b32.xlu0 %v362, 120
        %v371 = vpop.permute.xlu0 %370
        %s373 = scalar_lea.vmem %s206, 16 [#allocation7]
        %374 = vst.msk [vmem:[%s373] sm:$0xff] %vm363, %v371
        %376 = vrot.lane.b32.xlu0 %v366, 120
        %v377 = vpop.permute.xlu0 %376
        %s379 = scalar_lea.vmem %s206, 24 [#allocation7]
        %380 = vst.msk [vmem:[%s379] sm:$0xff] %vm363, %v377
        %s381 = sand.u32 %s102, 1
        %s382 = scalar_lea.sflag [#allocation4], %s381
        %s383 = sand.u32 %s102, 1
        %s384 = smul.addr %s383, 32
        %s385 = scalar_lea.vmem [#allocation7], %s384
        // Predicated region
        $region37: #{tpu_custom_call.1} parent=27 // pred_check
          %p386 = pneg %p112
        $region38: #{tpu_custom_call.1} parent=27 // pred_check_branch
          %388 = sbr.rel (%p386) target = $region40
        $region39: #{tpu_custom_call.1} parent=27 // pred_region
          %s390 = ssub.s32 512, 512
          %391 = vsyncadd %s382, %s390
          %s392 = sadd.s32 %s27, %s26
          %s393 = smul.addr %s25, 4
          %s394 = sadd.s32 %s392, %s393
          %s395 = smul.addr %s394, 128
          %s396 = scalar_lea.hbm %s2, %s395
          %s397 = sshll.u32 %s385, 4
          %s398 = int_to_ptr.vmem [resolvable:$true] %s397
          %403 = dma.vmem_to_hbm [thread:$0]  %s398, 512, %s396, %s382, 128, 128, 8
        $region40: #{tpu_custom_call.1} parent=27 // pred_fallthru
          _
      $region28: #{tpu_custom_call.1} parent=5 // pred_fallthru
        _
      %p404 = scmp.le.s32.totalorder 2, %s15
      // Predicated region
      $region41: #{tpu_custom_call.1} parent=5 // pred_check
        %p405 = pneg %p404
      $region42: #{tpu_custom_call.1} parent=5 // pred_check_branch
        %407 = sbr.rel (%p405) target = $region44
      $region43: #{tpu_custom_call.1} parent=5 // pred_region
        %s408 = ssub.s32 %s15, 2
        // Predicated region
        $region45: #{tpu_custom_call.1} parent=43 // pred_check
          %p409 = pneg %p118
        $region46: #{tpu_custom_call.1} parent=43 // pred_check_branch
          %411 = sbr.rel (%p409) target = $region48
        $region47: #{tpu_custom_call.1} parent=43 // pred_region
          %s412 = sand.u32 %s103, 1
          %s413 = scalar_lea.sflag [#allocation4], %s412
          %s414 = sand.u32 %s103, 1
          %s415 = smul.addr %s414, 32
          %s416 = scalar_lea.vmem [#allocation7], %s415
          %417 = dma.done %s413, 512
        $region48: #{tpu_custom_call.1} parent=43 // pred_fallthru
          _
      $region44: #{tpu_custom_call.1} parent=5 // pred_fallthru
        _
    $region6: #{tpu_custom_call.1} parent=1 // loop_footer
      %s19 = sadd.s32 1, %s15
    $region7: #{tpu_custom_call.1} parent=1 // loop_footer_branch
      %14 = sbr.rel target = $region3
    $region8: #{tpu_custom_call.1} parent=1 // loop_exit
      _
    %418 = vsyncpa [#allocation3], 1
    %s419 = scalar_lea.sflag [#allocation3], 1
    %420 = vsyncpa %s419, 1
    %421 = vsyncpa [#allocation6], 1
    %s422 = scalar_lea.sflag [#allocation6], 1
    %423 = vsyncpa %s422, 1
    %424 = vsyncpa [#allocation4], 1
    %s425 = scalar_lea.sflag [#allocation4], 1
    %426 = vsyncpa %s425, 1

</llo_original>
